<compile_context>
chip_gen: v6e
topology: v6e:2x2x1
jax: 0.10.0
libtpu: 0.0.40
codegen_flags: <defaults>
</compile_context>

<pallas_src>
import functools

import jax
import jax.numpy as jnp
from jax.experimental import pallas as pl
from jax.experimental.pallas import tpu as pltpu


def _round_up(x, m):
    return ((x + m - 1) // m) * m


@functools.lru_cache(maxsize=1)
def _tpu_tiling_defaults():
    """Generation-aware defaults (TN, TF, vmem_limit_bytes)."""
    vmem_cap = 64 * 1024 * 1024          # conservative fallback (v7x per-TC VMEM)
    try:
        vmem_cap = int(pltpu.get_tpu_info().vmem_capacity_bytes)
    except Exception:
        pass
    vmem_limit = min(int(vmem_cap * 0.75), 100 * 1024 * 1024)
    tn = 512 if vmem_cap >= 100 * 1024 * 1024 else 256   # v5e/v6e vs v7x-class
    tf = 512
    return tn, tf, vmem_limit


# ------------------------------- MoE kernel -------------------------------
def moe_group_kernel(tile_r, grp_r, lo_r, hi_r, first_r, valid_r,
                     x_ref, gate_ref, wg_ref, wu_ref, wd_ref, o_ref):
    # Scalar-prefetch (SMEM, 1-D int32) per step s:
    #   tile_r[s]  : token tile index           (used by index_maps)
    #   grp_r[s]   : expert index               (used by index_maps)
    #   lo_r/hi_r  : [lo, hi) rows of the tile owned by this expert
    #   first_r[s] : 1 iff first step visiting this tile
    #   valid_r[s] : 0 for padding (dummy) steps
    # x_ref:    (TN, H)    bf16 sorted-token tile
    # gate_ref: (1, 1, TN) f32 lane-dense per-row gates of this tile
    # wg_ref:   (1, H, TF) bf16 gate_proj chunk   wu_ref: (1, H, TF) up_proj
    # wd_ref:   (1, TF, H) bf16 down_proj chunk
    # o_ref:    (TN, H)    f32 output tile; accumulated in place (resident
    #           across the F axis and across consecutive steps of one tile).
    s = pl.program_id(0)
    fi = pl.program_id(1)

    @pl.when(jnp.logical_and(first_r[s] == 1, fi == 0))
    def _():
        o_ref[...] = jnp.zeros_like(o_ref)

    @pl.when(valid_r[s] == 1)
    def _():
        x = x_ref[...]                                               # bf16
        g = jnp.dot(x, wg_ref[0], preferred_element_type=jnp.float32)  # (TN,TF)
        u = jnp.dot(x, wu_ref[0], preferred_element_type=jnp.float32)  # (TN,TF)
        row = jax.lax.broadcasted_iota(jnp.int32, (x.shape[0], 1), 0)
        in_grp = jnp.logical_and(row >= lo_r[s], row < hi_r[s])      # (TN,1)
        gate = gate_ref[0, 0][:, None]                               # (TN,1) f32
        scale = jnp.where(in_grp, gate, 0.0)                         # mask+gate
        hmid = (g * jax.nn.sigmoid(g)) * u * scale                   # SiLU*up*g
        o_ref[...] += jnp.dot(hmid.astype(x.dtype), wd_ref[0],
                              preferred_element_type=jnp.float32)


def moe_grouped_mix(step_tile, step_group, step_lo, step_hi, step_first,
                    step_valid, x_sorted, gate_tiles, wg_t, wu_t, wd_t, *,
                    tn, tf, vmem_limit_bytes):
    m_pad, h = x_sorted.shape
    e_num, _, f = wg_t.shape
    nf = f // tf
    num_steps = step_tile.shape[0]
    return pl.pallas_call(
        moe_group_kernel,
        out_shape=jax.ShapeDtypeStruct((m_pad, h), jnp.float32),
        grid_spec=pltpu.PrefetchScalarGridSpec(
            num_scalar_prefetch=6,
            grid=(num_steps, nf),
            in_specs=[
                pl.BlockSpec((tn, h),
                             lambda s, fi, tl, gp, lo, hi, fr, vd: (tl[s], 0)),
                pl.BlockSpec((1, 1, tn),
                             lambda s, fi, tl, gp, lo, hi, fr, vd:
                             (tl[s], 0, 0)),
                # dummy steps pin fi to 0 so they do not re-stream weights
                pl.BlockSpec((1, h, tf),
                             lambda s, fi, tl, gp, lo, hi, fr, vd:
                             (gp[s], 0, fi * vd[s])),
                pl.BlockSpec((1, h, tf),
                             lambda s, fi, tl, gp, lo, hi, fr, vd:
                             (gp[s], 0, fi * vd[s])),
                pl.BlockSpec((1, tf, h),
                             lambda s, fi, tl, gp, lo, hi, fr, vd:
                             (gp[s], fi * vd[s], 0)),
            ],
            out_specs=pl.BlockSpec(
                (tn, h), lambda s, fi, tl, gp, lo, hi, fr, vd: (tl[s], 0)),
        ),
        compiler_params=pltpu.CompilerParams(
            # Consecutive steps may share an output tile -> step axis is not
            # parallel.  TODO(synk): explicit v7x 2-TC split of the step axis.
            dimension_semantics=("arbitrary", "arbitrary"),
            vmem_limit_bytes=vmem_limit_bytes,
        ),
    )(step_tile, step_group, step_lo, step_hi, step_first, step_valid,
      x_sorted, gate_tiles, wg_t, wu_t, wd_t)


# ------------------------------ full forward -------------------------------
@functools.partial(jax.jit,
                   static_argnames=("top_k", "tn", "tf", "vmem_limit_bytes"))
def _moe_ffn_forward(x, wr_t, br, wg_t, wu_t, wd_t, *, top_k, tn, tf,
                     vmem_limit_bytes):
    b, t, h = x.shape
    e_num = wr_t.shape[1]
    f = wg_t.shape[2]
    n = b * t
    m = n * top_k                      # number of (token, expert) assignments
    x_flat = x.reshape(n, h)

    # --- router: tiny H x E matmul + top-k + softmax.  Kept in plain XLA
    # (data-dependent top-k; E << 128 would make a Pallas router lane-masked).
    logits = (x_flat.astype(jnp.float32) @ wr_t.astype(jnp.float32)
              + br.astype(jnp.float32))                               # (N, E)
    topk_logits, indices = jax.lax.top_k(logits, top_k)               # (N, K)
    gates = jax.nn.softmax(topk_logits, axis=-1)                      # (N, K)

    # --- static tiling (multiples of 16 for bf16 sublane packing) ---
    tn_eff = min(tn, _round_up(m, 16))
    m_pad = _round_up(m, tn_eff)
    num_tiles = m_pad // tn_eff
    tf_eff = tf if (tf <= f and f % tf == 0) else f

    # keep the double-buffered working set under the scoped VMEM limit by
    # shrinking TF (never TN: TN sets MXU M-dim and weight-stream intensity).
    def _est_bytes(tf_):
        return 2 * (tn_eff * h * 2            # x tile (bf16)
                    + 3 * h * tf_ * 2         # wg/wu/wd chunks (bf16)
                    + tn_eff * h * 4)         # f32 output tile
    while (_est_bytes(tf_eff) > int(0.85 * vmem_limit_bytes)
           and tf_eff % 256 == 0 and f % (tf_eff // 2) == 0):
        tf_eff //= 2

    pad = m_pad - m
    num_steps = num_tiles + e_num - 1   # static bound on (tile, group) visits

    # --- grouped (megablocks-style) dispatch: sort assignments by expert ---
    flat_expert = indices.reshape(-1).astype(jnp.int32)               # (M,)
    flat_token = jnp.repeat(jnp.arange(n, dtype=jnp.int32), top_k)    # (M,)
    flat_gate = gates.reshape(-1)                                     # (M,)

    order = jnp.argsort(flat_expert)
    sorted_token = flat_token[order]
    sorted_gate = flat_gate[order]

    token_p = jnp.pad(sorted_token, (0, pad))          # pad rows -> token 0
    gate_p = jnp.pad(sorted_gate, (0, pad))            # pad rows -> gate 0

    x_sorted = x_flat.astype(jnp.bfloat16)[token_p]    # (M_pad, H) gather
    gate_tiles = gate_p.reshape(num_tiles, 1, tn_eff)  # lane-dense gate layout

    group_sizes = jnp.bincount(flat_expert, length=e_num).astype(jnp.int32)
    group_ends = jnp.cumsum(group_sizes).astype(jnp.int32)            # (E,)
    group_starts = jnp.concatenate(
        [jnp.zeros((1,), jnp.int32), group_ends[:-1]])                # (E,)
    tiles_per_group = jnp.where(
        group_sizes > 0,
        (group_ends - 1) // tn_eff - group_starts // tn_eff + 1,
        0).astype(jnp.int32)
    step_bounds = jnp.concatenate(
        [jnp.zeros((1,), jnp.int32),
         jnp.cumsum(tiles_per_group).astype(jnp.int32)])              # (E+1,)
    total_steps = step_bounds[-1]

    s_idx = jnp.arange(num_steps, dtype=jnp.int32)
    g_of_s = jnp.clip(
        jnp.searchsorted(step_bounds, s_idx, side="right") - 1,
        0, e_num - 1).astype(jnp.int32)
    tile_of_s = group_starts[g_of_s] // tn_eff + (s_idx - step_bounds[g_of_s])
    lo_of_s = jnp.maximum(group_starts[g_of_s] - tile_of_s * tn_eff, 0)
    hi_of_s = jnp.minimum(group_ends[g_of_s] - tile_of_s * tn_eff, tn_eff)
    valid = s_idx < total_steps

    step_tile = jnp.where(valid, tile_of_s, num_tiles - 1).astype(jnp.int32)
    step_group = jnp.where(valid, g_of_s, 0).astype(jnp.int32)
    step_lo = jnp.where(valid, lo_of_s, 0).astype(jnp.int32)
    step_hi = jnp.where(valid, hi_of_s, 0).astype(jnp.int32)
    step_valid = valid.astype(jnp.int32)
    prev_tile = jnp.concatenate(
        [jnp.full((1,), -1, jnp.int32), step_tile[:-1]])
    step_first = (step_tile != prev_tile).astype(jnp.int32)

    # bf16 operands for the MXU (f32 accumulation inside the kernel).
    y_sorted = moe_grouped_mix(
        step_tile, step_group, step_lo, step_hi, step_first, step_valid,
        x_sorted, gate_tiles,
        wg_t.astype(jnp.bfloat16), wu_t.astype(jnp.bfloat16),
        wd_t.astype(jnp.bfloat16),
        tn=tn_eff, tf=tf_eff, vmem_limit_bytes=vmem_limit_bytes)

    # un-permute + combine the top_k gated contributions per token (XLA
    # scatter-add; padded rows are exactly zero so token 0 is unaffected).
    out_flat = jax.ops.segment_sum(y_sorted, token_p, num_segments=n)
    return out_flat.astype(x.dtype).reshape(b, t, h)


def moe_ffn_forward(x, wr_t, br, wg_t, wu_t, wd_t, *, top_k,
                    tn=None, tf=None, vmem_limit_bytes=None):
    d_tn, d_tf, d_vmem = _tpu_tiling_defaults()
    return _moe_ffn_forward(
        x, wr_t, br, wg_t, wu_t, wd_t, top_k=top_k,
        tn=int(tn or d_tn), tf=int(tf or d_tf),
        vmem_limit_bytes=int(vmem_limit_bytes or d_vmem))


# ------------------------------ pure-JAX ref --------------------------------
def moe_ffn_reference(x, wr_t, br, wg_t, wu_t, wd_t, *, top_k):
    b, t, h = x.shape
    e_num = wr_t.shape[1]
    x_flat = x.reshape(-1, h)
    logits = x_flat @ wr_t + br
    topk_logits, indices = jax.lax.top_k(logits, top_k)
    gates = jax.nn.softmax(topk_logits, axis=-1)
    gate_dense = jnp.sum(
        jax.nn.one_hot(indices, e_num, dtype=gates.dtype) * gates[..., None],
        axis=1,
    )
    out = jnp.zeros_like(x_flat)
    for e in range(e_num):
        g = x_flat @ wg_t[e]
        u = x_flat @ wu_t[e]
        y = (jax.nn.silu(g) * u) @ wd_t[e]
        out = out + y * gate_dense[:, e:e + 1]
    return out.reshape(b, t, h)


if __name__ == "__main__":
    # Small shapes consistent with the module's forward: x is (B, T, H).
    B, T, H = 2, 8, 32          # 16 tokens total
    E, K, F = 4, 2, 64          # num_experts, top_k, expert intermediate dim

    key = jax.random.PRNGKey(0)
    k_x, k_wr, k_br, k_wg, k_wu, k_wd = jax.random.split(key, 6)

    x = jax.random.normal(k_x, (B, T, H), dtype=jnp.float32)

    # Router: nn.Linear(H, E) -> weight (E, H), bias (E,). Stored transposed.
    wr_t = jax.random.normal(k_wr, (H, E), dtype=jnp.float32) * 0.1
    br = jax.random.normal(k_br, (1, E), dtype=jnp.float32) * 0.1

    # Experts: gate/up proj (F, H), down proj (H, F) per expert; stored transposed.
    wg_t = jax.random.normal(k_wg, (E, H, F), dtype=jnp.float32) * 0.1
    wu_t = jax.random.normal(k_wu, (E, H, F), dtype=jnp.float32) * 0.1
    wd_t = jax.random.normal(k_wd, (E, F, H), dtype=jnp.float32) * 0.1

    out = moe_ffn_forward(x, wr_t, br, wg_t, wu_t, wd_t, top_k=K)
    out = jax.block_until_ready(out)

    ref = moe_ffn_reference(x, wr_t, br, wg_t, wu_t, wd_t, top_k=K)
    assert out.shape == (B, T, H)
    # bf16 matmul operands / bf16 SiLU intermediate (f32 accumulation) vs a
    # full-f32 reference -> loosened tolerance.
    assert jnp.allclose(out, ref, atol=2e-2, rtol=2e-2), "mismatch vs reference"

    print("KERNEL_OK")
</pallas_src>

<mosaic_0001>
module attributes {stable_mosaic.version = 11 : i64} {
  func.func private @main(%arg0: i32) attributes {dimension_semantics = [#tpu.dimension_semantics<core_parallel>], iteration_bounds = array<i64: 2>, tpu.core_type = #tpu.core_type<sc_scalar_subcore>, window_params = []} {
    return
  }
}

module attributes {stable_mosaic.version = 11 : i64} {
  func.func private @main(%arg0: i32) attributes {dimension_semantics = [#tpu.dimension_semantics<core_parallel>], iteration_bounds = array<i64: 2>, tpu.core_type = #tpu.core_type<sc_scalar_subcore>, window_params = []} {
    return
  }
}

module attributes {stable_mosaic.version = 11 : i64} {
  func.func @moe_group_kernel(%arg0: i32, %arg1: i32, %arg2: memref<4xi32, #tpu.memory_space<smem>>, %arg3: memref<4xi32, #tpu.memory_space<smem>>, %arg4: memref<4xi32, #tpu.memory_space<smem>>, %arg5: memref<4xi32, #tpu.memory_space<smem>>, %arg6: memref<4xi32, #tpu.memory_space<smem>>, %arg7: memref<4xi32, #tpu.memory_space<smem>>, %arg8: memref<32x32xbf16, #tpu.memory_space<vmem>>, %arg9: memref<1x1x32xf32, #tpu.memory_space<vmem>>, %arg10: memref<1x32x64xbf16, #tpu.memory_space<vmem>>, %arg11: memref<1x32x64xbf16, #tpu.memory_space<vmem>>, %arg12: memref<1x64x32xbf16, #tpu.memory_space<vmem>>, %arg13: memref<32x32xf32, #tpu.memory_space<vmem>>) attributes {dimension_semantics = [#tpu.dimension_semantics<arbitrary>, #tpu.dimension_semantics<arbitrary>], iteration_bounds = array<i64: 4, 1>, scalar_prefetch = 6 : i64, scratch_operands = 0 : i64, tpu.core_type = #tpu.core_type<tc>, window_params = [{transform_indices = @transform_0, window_bounds = array<i64: 32, 32>}, {transform_indices = @transform_1, window_bounds = array<i64: 1, 1, 32>}, {transform_indices = @transform_2, window_bounds = array<i64: 1, 32, 64>}, {transform_indices = @transform_3, window_bounds = array<i64: 1, 32, 64>}, {transform_indices = @transform_4, window_bounds = array<i64: 1, 64, 32>}, {transform_indices = @transform_5, window_bounds = array<i64: 32, 32>}]} {
    %0 = arith.index_cast %arg0 : i32 to index
    %1 = memref.load %arg6[%0] : memref<4xi32, #tpu.memory_space<smem>>
    %c1_i32 = arith.constant 1 : i32
    %2 = arith.cmpi eq, %1, %c1_i32 : i32
    %c0_i32 = arith.constant 0 : i32
    %3 = arith.cmpi eq, %arg1, %c0_i32 : i32
    %4 = arith.andi %2, %3 : i1
    %5 = arith.extui %4 : i1 to i32
    %c0_i32_0 = arith.constant 0 : i32
    %6 = arith.cmpi ne, %5, %c0_i32_0 : i32
    scf.if %6 {
      %cst = arith.constant 0.000000e+00 : f32
      %12 = vector.broadcast %cst : f32 to vector<32x32xf32>
      %c0 = arith.constant 0 : index
      %c0_3 = arith.constant 0 : index
      %13 = vector.load %arg13[%c0, %c0_3] : memref<32x32xf32, #tpu.memory_space<vmem>>, vector<32x32xf32>
      tpu.vector_store %arg13[%c0, %c0_3], %12 {strides = array<i32>} : memref<32x32xf32, #tpu.memory_space<vmem>>, vector<32x32xf32>,
    } else {
    }
    %7 = arith.index_cast %arg0 : i32 to index
    %8 = memref.load %arg7[%7] : memref<4xi32, #tpu.memory_space<smem>>
    %c1_i32_1 = arith.constant 1 : i32
    %9 = arith.cmpi eq, %8, %c1_i32_1 : i32
    %10 = arith.extui %9 : i1 to i32
    %c0_i32_2 = arith.constant 0 : i32
    %11 = arith.cmpi ne, %10, %c0_i32_2 : i32
    scf.if %11 {
      %c0 = arith.constant 0 : index
      %c0_3 = arith.constant 0 : index
      %12 = vector.load %arg8[%c0, %c0_3] : memref<32x32xbf16, #tpu.memory_space<vmem>>, vector<32x32xbf16>
      %c0_4 = arith.constant 0 : index
      %c0_5 = arith.constant 0 : index
      %c0_6 = arith.constant 0 : index
      %13 = vector.load %arg10[%c0_4, %c0_5, %c0_6] : memref<1x32x64xbf16, #tpu.memory_space<vmem>>, vector<1x32x64xbf16>
      %14 = vector.shape_cast %13 : vector<1x32x64xbf16> to vector<32x64xbf16>
      %cst = arith.constant dense<0.000000e+00> : vector<32x64xf32>
      %15 = tpu.matmul %12, %14, %cst {dimension_numbers = #tpu.dot_dimension_numbers<[1], [0], [0], [1], [0, 0, 1, 1], [], []>} : vector<32x32xbf16>, vector<32x64xbf16>, vector<32x64xf32> -> vector<32x64xf32>
      %c0_7 = arith.constant 0 : index
      %c0_8 = arith.constant 0 : index
      %c0_9 = arith.constant 0 : index
      %16 = vector.load %arg11[%c0_7, %c0_8, %c0_9] : memref<1x32x64xbf16, #tpu.memory_space<vmem>>, vector<1x32x64xbf16>
      %17 = vector.shape_cast %16 : vector<1x32x64xbf16> to vector<32x64xbf16>
      %cst_10 = arith.constant dense<0.000000e+00> : vector<32x64xf32>
      %18 = tpu.matmul %12, %17, %cst_10 {dimension_numbers = #tpu.dot_dimension_numbers<[1], [0], [0], [1], [0, 0, 1, 1], [], []>} : vector<32x32xbf16>, vector<32x64xbf16>, vector<32x64xf32> -> vector<32x64xf32>
      %19 = tpu.iota {dimensions = array<i32: 0>} : vector<32x1xi32>
      %20 = arith.index_cast %arg0 : i32 to index
      %21 = memref.load %arg4[%20] : memref<4xi32, #tpu.memory_space<smem>>
      %22 = vector.broadcast %21 : i32 to vector<32x1xi32>
      %23 = arith.cmpi sge, %19, %22 : vector<32x1xi32>
      %24 = arith.index_cast %arg0 : i32 to index
      %25 = memref.load %arg5[%24] : memref<4xi32, #tpu.memory_space<smem>>
      %26 = vector.broadcast %25 : i32 to vector<32x1xi32>
      %27 = arith.cmpi slt, %19, %26 : vector<32x1xi32>
      %28 = arith.andi %23, %27 : vector<32x1xi1>
      %c0_11 = arith.constant 0 : index
      %c0_12 = arith.constant 0 : index
      %c0_13 = arith.constant 0 : index
      %29 = vector.load %arg9[%c0_11, %c0_12, %c0_13] : memref<1x1x32xf32, #tpu.memory_space<vmem>>, vector<1x1x32xf32>
      %30 = vector.shape_cast %29 : vector<1x1x32xf32> to vector<32xf32>
      %31 = vector.shape_cast %30 : vector<32xf32> to vector<32x1xf32>
      %cst_14 = arith.constant 0.000000e+00 : f32
      %32 = vector.broadcast %cst_14 : f32 to vector<32x1xf32>
      %33 = arith.select %28, %31, %32 : vector<32x1xi1>, vector<32x1xf32>
      %34 = arith.negf %15 : vector<32x64xf32>
      %35 = math.exp %34 : vector<32x64xf32>
      %cst_15 = arith.constant 1.000000e+00 : f32
      %36 = vector.broadcast %cst_15 : f32 to vector<32x64xf32>
      %37 = arith.addf %36, %35 : vector<32x64xf32>
      %38 = arith.divf %36, %37 : vector<32x64xf32>
      %39 = arith.mulf %15, %38 : vector<32x64xf32>
      %40 = arith.mulf %39, %18 : vector<32x64xf32>
      %41 = vector.broadcast %33 : vector<32x1xf32> to vector<32x64xf32>
      %42 = arith.mulf %40, %41 : vector<32x64xf32>
      %c0_16 = arith.constant 0 : index
      %c0_17 = arith.constant 0 : index
      %43 = vector.load %arg13[%c0_16, %c0_17] : memref<32x32xf32, #tpu.memory_space<vmem>>, vector<32x32xf32>
      %44 = arith.truncf %42 : vector<32x64xf32> to vector<32x64xbf16>
      %c0_18 = arith.constant 0 : index
      %c0_19 = arith.constant 0 : index
      %c0_20 = arith.constant 0 : index
      %45 = vector.load %arg12[%c0_18, %c0_19, %c0_20] : memref<1x64x32xbf16, #tpu.memory_space<vmem>>, vector<1x64x32xbf16>
      %46 = vector.shape_cast %45 : vector<1x64x32xbf16> to vector<64x32xbf16>
      %cst_21 = arith.constant dense<0.000000e+00> : vector<32x32xf32>
      %47 = tpu.matmul %44, %46, %cst_21 {dimension_numbers = #tpu.dot_dimension_numbers<[1], [0], [0], [1], [0, 0, 1, 1], [], []>} : vector<32x64xbf16>, vector<64x32xbf16>, vector<32x32xf32> -> vector<32x32xf32>
      %48 = arith.addf %43, %47 : vector<32x32xf32>
      %c0_22 = arith.constant 0 : index
      %c0_23 = arith.constant 0 : index
      %49 = vector.load %arg13[%c0_22, %c0_23] : memref<32x32xf32, #tpu.memory_space<vmem>>, vector<32x32xf32>
      tpu.vector_store %arg13[%c0_22, %c0_23], %48 {strides = array<i32>} : memref<32x32xf32, #tpu.memory_space<vmem>>, vector<32x32xf32>,
    } else {
    }
    return
  }
  func.func @transform_0(%arg0: i32, %arg1: i32, %arg2: memref<4xi32, #tpu.memory_space<smem>>, %arg3: memref<4xi32, #tpu.memory_space<smem>>, %arg4: memref<4xi32, #tpu.memory_space<smem>>, %arg5: memref<4xi32, #tpu.memory_space<smem>>, %arg6: memref<4xi32, #tpu.memory_space<smem>>, %arg7: memref<4xi32, #tpu.memory_space<smem>>) -> (i32, i32) {
    %0 = arith.index_cast %arg0 : i32 to index
    %1 = memref.load %arg2[%0] : memref<4xi32, #tpu.memory_space<smem>>
    %c0_i32 = arith.constant 0 : i32
    %c0_i32_0 = arith.constant 0 : i32
    return %1, %c0_i32 : i32, i32
  }
  func.func @transform_1(%arg0: i32, %arg1: i32, %arg2: memref<4xi32, #tpu.memory_space<smem>>, %arg3: memref<4xi32, #tpu.memory_space<smem>>, %arg4: memref<4xi32, #tpu.memory_space<smem>>, %arg5: memref<4xi32, #tpu.memory_space<smem>>, %arg6: memref<4xi32, #tpu.memory_space<smem>>, %arg7: memref<4xi32, #tpu.memory_space<smem>>) -> (i32, i32, i32) {
    %0 = arith.index_cast %arg0 : i32 to index
    %1 = memref.load %arg2[%0] : memref<4xi32, #tpu.memory_space<smem>>
    %c0_i32 = arith.constant 0 : i32
    %c0_i32_0 = arith.constant 0 : i32
    %c0_i32_1 = arith.constant 0 : i32
    return %1, %c0_i32, %c0_i32_0 : i32, i32, i32
  }
  func.func @transform_2(%arg0: i32, %arg1: i32, %arg2: memref<4xi32, #tpu.memory_space<smem>>, %arg3: memref<4xi32, #tpu.memory_space<smem>>, %arg4: memref<4xi32, #tpu.memory_space<smem>>, %arg5: memref<4xi32, #tpu.memory_space<smem>>, %arg6: memref<4xi32, #tpu.memory_space<smem>>, %arg7: memref<4xi32, #tpu.memory_space<smem>>) -> (i32, i32, i32) {
    %0 = arith.index_cast %arg0 : i32 to index
    %1 = memref.load %arg3[%0] : memref<4xi32, #tpu.memory_space<smem>>
    %2 = arith.index_cast %arg0 : i32 to index
    %3 = memref.load %arg7[%2] : memref<4xi32, #tpu.memory_space<smem>>
    %4 = arith.muli %arg1, %3 : i32
    %c0_i32 = arith.constant 0 : i32
    %c0_i32_0 = arith.constant 0 : i32
    return %1, %c0_i32, %4 : i32, i32, i32
  }
  func.func @transform_3(%arg0: i32, %arg1: i32, %arg2: memref<4xi32, #tpu.memory_space<smem>>, %arg3: memref<4xi32, #tpu.memory_space<smem>>, %arg4: memref<4xi32, #tpu.memory_space<smem>>, %arg5: memref<4xi32, #tpu.memory_space<smem>>, %arg6: memref<4xi32, #tpu.memory_space<smem>>, %arg7: memref<4xi32, #tpu.memory_space<smem>>) -> (i32, i32, i32) {
    %0 = arith.index_cast %arg0 : i32 to index
    %1 = memref.load %arg3[%0] : memref<4xi32, #tpu.memory_space<smem>>
    %2 = arith.index_cast %arg0 : i32 to index
    %3 = memref.load %arg7[%2] : memref<4xi32, #tpu.memory_space<smem>>
    %4 = arith.muli %arg1, %3 : i32
    %c0_i32 = arith.constant 0 : i32
    %c0_i32_0 = arith.constant 0 : i32
    return %1, %c0_i32, %4 : i32, i32, i32
  }
  func.func @transform_4(%arg0: i32, %arg1: i32, %arg2: memref<4xi32, #tpu.memory_space<smem>>, %arg3: memref<4xi32, #tpu.memory_space<smem>>, %arg4: memref<4xi32, #tpu.memory_space<smem>>, %arg5: memref<4xi32, #tpu.memory_space<smem>>, %arg6: memref<4xi32, #tpu.memory_space<smem>>, %arg7: memref<4xi32, #tpu.memory_space<smem>>) -> (i32, i32, i32) {
    %0 = arith.index_cast %arg0 : i32 to index
    %1 = memref.load %arg3[%0] : memref<4xi32, #tpu.memory_space<smem>>
    %2 = arith.index_cast %arg0 : i32 to index
    %3 = memref.load %arg7[%2] : memref<4xi32, #tpu.memory_space<smem>>
    %4 = arith.muli %arg1, %3 : i32
    %c0_i32 = arith.constant 0 : i32
    %c0_i32_0 = arith.constant 0 : i32
    return %1, %4, %c0_i32 : i32, i32, i32
  }
  func.func @transform_5(%arg0: i32, %arg1: i32, %arg2: memref<4xi32, #tpu.memory_space<smem>>, %arg3: memref<4xi32, #tpu.memory_space<smem>>, %arg4: memref<4xi32, #tpu.memory_space<smem>>, %arg5: memref<4xi32, #tpu.memory_space<smem>>, %arg6: memref<4xi32, #tpu.memory_space<smem>>, %arg7: memref<4xi32, #tpu.memory_space<smem>>) -> (i32, i32) {
    %0 = arith.index_cast %arg0 : i32 to index
    %1 = memref.load %arg2[%0] : memref<4xi32, #tpu.memory_space<smem>>
    %c0_i32 = arith.constant 0 : i32
    %c0_i32_0 = arith.constant 0 : i32
    return %1, %c0_i32 : i32, i32
  }
}

</mosaic_0001>

<llo_original>
// kernel: custom-call
$region0: #{custom-call}
  %s0 = inlined_call_operand.vmem [shape: u32[4], index: 0, kind: output, shape index: {}]

// kernel: _moe_ffn_forward.1
$region0: #{_moe_ffn_forward.1}
  #allocation0 [shape = 'u32[]', space=smem, size = 0x4, offset = 0x4, fixed_abs, tag = 'smem constant byte address 0x4 - core index']
  #allocation1 [shape = 'u32[144,128]{1,0:T(1,128)}', space=vmem, size = 0x12000, scoped, tag = 'internal scratch']
  #allocation2 [shape = 's32[1]{0}', space=sflag, size = 0x4, scoped, tag = 'scoped memory for _moe_ffn_forward.1']
  #allocation3 [shape = 'u8[512]{0}', space=smem, size = 0x200, scoped, tag = 'prefetched SMEM operand 0']
  #allocation4 [shape = 'u8[512]{0}', space=smem, size = 0x200, scoped, tag = 'prefetched SMEM operand 1']
  #allocation5 [shape = 'u8[512]{0}', space=smem, size = 0x200, scoped, tag = 'prefetched SMEM operand 2']
  #allocation6 [shape = 'u8[512]{0}', space=smem, size = 0x200, scoped, tag = 'prefetched SMEM operand 3']
  #allocation7 [shape = 'u8[512]{0}', space=smem, size = 0x200, scoped, tag = 'prefetched SMEM operand 4']
  #allocation8 [shape = 'u8[512]{0}', space=smem, size = 0x200, scoped, tag = 'prefetched SMEM operand 5']
  %s0 = inlined_call_operand.vmem [shape: s32[4], index: 0, kind: input, shape index: {}]
  %s1 = inlined_call_operand.vmem [shape: s32[4], index: 1, kind: input, shape index: {}]
  %s2 = inlined_call_operand.vmem [shape: s32[4], index: 2, kind: input, shape index: {}]
  %s3 = inlined_call_operand.vmem [shape: s32[4], index: 3, kind: input, shape index: {}]
  %s4 = inlined_call_operand.vmem [shape: s32[4], index: 4, kind: input, shape index: {}]
  %s5 = inlined_call_operand.vmem [shape: s32[4], index: 5, kind: input, shape index: {}]
  %s6 = inlined_call_operand.vmem [shape: bf16[32,32], index: 6, kind: input, shape index: {}]
  %s7 = inlined_call_operand.vmem [shape: f32[1,1,32], index: 7, kind: input, shape index: {}]
  %s8 = inlined_call_operand.vmem [shape: bf16[4,32,64], index: 8, kind: input, shape index: {}]
  %s9 = inlined_call_operand.vmem [shape: bf16[4,32,64], index: 9, kind: input, shape index: {}]
  %s10 = inlined_call_operand.vmem [shape: bf16[4,64,32], index: 10, kind: input, shape index: {}]
  %s11 = inlined_call_operand.vmem [shape: f32[32,32], index: 11, kind: output, shape index: {}]
  %s12 = sld [smem:[#allocation0]]
  $region61: #{_moe_ffn_forward.1} parent=0
    _
  %s14 = ssub.s32 1, %s12
  %s15 = scalar_select 0, %s14, %s12
  %s16 = sshll.u32 %s0, 4
  %s17 = int_to_ptr.vmem [resolvable:$true] %s16
  %19 = dma.vmem_to_smem %s17, 16, [#allocation3], [#allocation2]
  %s20 = sshll.u32 %s1, 4
  %s21 = int_to_ptr.vmem [resolvable:$true] %s20
  %23 = dma.vmem_to_smem %s21, 16, [#allocation4], [#allocation2]
  %s24 = sshll.u32 %s2, 4
  %s25 = int_to_ptr.vmem [resolvable:$true] %s24
  %27 = dma.vmem_to_smem %s25, 16, [#allocation5], [#allocation2]
  %s28 = sshll.u32 %s3, 4
  %s29 = int_to_ptr.vmem [resolvable:$true] %s28
  %31 = dma.vmem_to_smem %s29, 16, [#allocation6], [#allocation2]
  %s32 = sshll.u32 %s4, 4
  %s33 = int_to_ptr.vmem [resolvable:$true] %s32
  %35 = dma.vmem_to_smem %s33, 16, [#allocation7], [#allocation2]
  %s36 = sshll.u32 %s5, 4
  %s37 = int_to_ptr.vmem [resolvable:$true] %s36
  %39 = dma.vmem_to_smem %s37, 16, [#allocation8], [#allocation2]
  %40 = dma.done [#allocation2], 96
  %41 = sfence
  loop: start=0, step=1, limit=6
  $region2: #{_moe_ffn_forward.1} parent=0 // loop_pre_header
    _
  $region3: #{_moe_ffn_forward.1} parent=0 // loop_header
    %s43 = sphi 0, %s47
    %p44 = scmp.ge.s32.totalorder %s43, 6
    %s50 = sphi 0, %s62
    %s51 = sphi 0, %s58
    %s52 = sphi 0, %s50
    %s53 = sphi 0, %s51
    %s54 = sphi 0, %s52
    %s55 = sphi 0, %s53
    %s67 = sphi 0, %s69
    %s70 = sphi 0, %s67
    %s71 = sphi 0, %s70
    %s87 = sphi 0, %s71
    %s95 = sphi 0, %s97
    %s98 = sphi 0, %s95
    %s99 = sphi 0, %s98
    %s115 = sphi 0, %s99
    %s129 = sphi 0, %s131
    %s132 = sphi 0, %s129
    %s133 = sphi 0, %s132
    %s149 = sphi 0, %s133
    %s163 = sphi 0, %s165
    %s166 = sphi 0, %s163
    %s167 = sphi 0, %s166
    %s183 = sphi 0, %s167
    %s197 = sphi 0, %s199
    %s200 = sphi 0, %s197
    %s201 = sphi 0, %s200
    %s217 = sphi 0, %s201
    %s225 = sphi 0, %s227
    %s228 = sphi 0, %s225
    %s229 = sphi 0, %s228
    %s245 = sphi 0, %s229
  $region4: #{_moe_ffn_forward.1} parent=0 // loop_header_branch
    %46 = sbr.rel (%p44) target = $region8
  $region5: #{_moe_ffn_forward.1} parent=0 // loop_body
    %s48 = ssub.s32 %s43, 1
    %s49 = ssub.s32 %s43, 2
    %s56 = sadd.s32 1, %s51
    %p57 = scmp.ge.s32.totalorder %s56, 1
    %s58 = scalar_select %p57, 0, %s56
    %s59 = sadd.s32 1, %s50
    %s60 = scalar_select %p57, %s59, %s50
    %p61 = scmp.ge.s32.totalorder %s60, 4
    %s62 = scalar_select %p61, 0, %s60
    %s63 = sld [smem:[#allocation3 + %s50]]
    %s64 = sld [smem:[#allocation3 + %s62]]
    %s65 = ssub.s32 %s63, %s64
    %p66 = scmp.eq.s32.totalorder %s65, 0
    %s68 = sadd.s32 %s67, 1
    %s69 = scalar_select %p66, %s67, %s68
    %p72 = pneg %p66
    %p73 = scmp.eq.s32.totalorder %s43, 3
    %p74 = por %p72, %p73
    %p75 = scmp.ne.s32.totalorder %s67, %s70
    %p76 = scmp.eq.s32.totalorder %s43, 0
    %p77 = por %p75, %p76
    %p78 = scmp.ne.s32.totalorder %s67, %s70
    %p79 = scmp.eq.s32.totalorder %s48, 3
    %p80 = por %p78, %p79
    %p81 = scmp.ne.s32.totalorder %s70, %s71
    %p82 = scmp.eq.s32.totalorder %s48, 0
    %p83 = por %p81, %p82
    %p84 = scmp.ne.s32.totalorder %s70, %s71
    %p85 = scmp.eq.s32.totalorder %s49, 3
    %p86 = por %p84, %p85
    %p88 = scmp.ne.s32.totalorder %s71, %s87
    %p89 = scmp.eq.s32.totalorder %s49, 0
    %p90 = por %p88, %p89
    %s91 = sld [smem:[#allocation3 + %s50]]
    %s92 = sld [smem:[#allocation3 + %s62]]
    %s93 = ssub.s32 %s91, %s92
    %p94 = scmp.eq.s32.totalorder %s93, 0
    %s96 = sadd.s32 %s95, 1
    %s97 = scalar_select %p94, %s95, %s96
    %p100 = pneg %p94
    %p101 = scmp.eq.s32.totalorder %s43, 3
    %p102 = por %p100, %p101
    %p103 = scmp.ne.s32.totalorder %s95, %s98
    %p104 = scmp.eq.s32.totalorder %s43, 0
    %p105 = por %p103, %p104
    %p106 = scmp.ne.s32.totalorder %s95, %s98
    %p107 = scmp.eq.s32.totalorder %s48, 3
    %p108 = por %p106, %p107
    %p109 = scmp.ne.s32.totalorder %s98, %s99
    %p110 = scmp.eq.s32.totalorder %s48, 0
    %p111 = por %p109, %p110
    %p112 = scmp.ne.s32.totalorder %s98, %s99
    %p113 = scmp.eq.s32.totalorder %s49, 3
    %p114 = por %p112, %p113
    %p116 = scmp.ne.s32.totalorder %s99, %s115
    %p117 = scmp.eq.s32.totalorder %s49, 0
    %p118 = por %p116, %p117
    %s119 = sld [smem:[#allocation4 + %s50]]
    %s120 = sld [smem:[#allocation8 + %s50]]
    %s121 = smul.u32 %s51, %s120
    %s122 = sld [smem:[#allocation4 + %s62]]
    %s123 = sld [smem:[#allocation8 + %s62]]
    %s124 = smul.u32 %s58, %s123
    %s125 = ssub.s32 %s119, %s122
    %s126 = ssub.s32 %s121, %s124
    %s127 = sor.u32 %s125, %s126
    %p128 = scmp.eq.s32.totalorder %s127, 0
    %s130 = sadd.s32 %s129, 1
    %s131 = scalar_select %p128, %s129, %s130
    %p134 = pneg %p128
    %p135 = scmp.eq.s32.totalorder %s43, 3
    %p136 = por %p134, %p135
    %p137 = scmp.ne.s32.totalorder %s129, %s132
    %p138 = scmp.eq.s32.totalorder %s43, 0
    %p139 = por %p137, %p138
    %p140 = scmp.ne.s32.totalorder %s129, %s132
    %p141 = scmp.eq.s32.totalorder %s48, 3
    %p142 = por %p140, %p141
    %p143 = scmp.ne.s32.totalorder %s132, %s133
    %p144 = scmp.eq.s32.totalorder %s48, 0
    %p145 = por %p143, %p144
    %p146 = scmp.ne.s32.totalorder %s132, %s133
    %p147 = scmp.eq.s32.totalorder %s49, 3
    %p148 = por %p146, %p147
    %p150 = scmp.ne.s32.totalorder %s133, %s149
    %p151 = scmp.eq.s32.totalorder %s49, 0
    %p152 = por %p150, %p151
    %s153 = sld [smem:[#allocation4 + %s50]]
    %s154 = sld [smem:[#allocation8 + %s50]]
    %s155 = smul.u32 %s51, %s154
    %s156 = sld [smem:[#allocation4 + %s62]]
    %s157 = sld [smem:[#allocation8 + %s62]]
    %s158 = smul.u32 %s58, %s157
    %s159 = ssub.s32 %s153, %s156
    %s160 = ssub.s32 %s155, %s158
    %s161 = sor.u32 %s159, %s160
    %p162 = scmp.eq.s32.totalorder %s161, 0
    %s164 = sadd.s32 %s163, 1
    %s165 = scalar_select %p162, %s163, %s164
    %p168 = pneg %p162
    %p169 = scmp.eq.s32.totalorder %s43, 3
    %p170 = por %p168, %p169
    %p171 = scmp.ne.s32.totalorder %s163, %s166
    %p172 = scmp.eq.s32.totalorder %s43, 0
    %p173 = por %p171, %p172
    %p174 = scmp.ne.s32.totalorder %s163, %s166
    %p175 = scmp.eq.s32.totalorder %s48, 3
    %p176 = por %p174, %p175
    %p177 = scmp.ne.s32.totalorder %s166, %s167
    %p178 = scmp.eq.s32.totalorder %s48, 0
    %p179 = por %p177, %p178
    %p180 = scmp.ne.s32.totalorder %s166, %s167
    %p181 = scmp.eq.s32.totalorder %s49, 3
    %p182 = por %p180, %p181
    %p184 = scmp.ne.s32.totalorder %s167, %s183
    %p185 = scmp.eq.s32.totalorder %s49, 0
    %p186 = por %p184, %p185
    %s187 = sld [smem:[#allocation4 + %s50]]
    %s188 = sld [smem:[#allocation8 + %s50]]
    %s189 = smul.u32 %s51, %s188
    %s190 = sld [smem:[#allocation4 + %s62]]
    %s191 = sld [smem:[#allocation8 + %s62]]
    %s192 = smul.u32 %s58, %s191
    %s193 = ssub.s32 %s187, %s190
    %s194 = ssub.s32 %s189, %s192
    %s195 = sor.u32 %s193, %s194
    %p196 = scmp.eq.s32.totalorder %s195, 0
    %s198 = sadd.s32 %s197, 1
    %s199 = scalar_select %p196, %s197, %s198
    %p202 = pneg %p196
    %p203 = scmp.eq.s32.totalorder %s43, 3
    %p204 = por %p202, %p203
    %p205 = scmp.ne.s32.totalorder %s197, %s200
    %p206 = scmp.eq.s32.totalorder %s43, 0
    %p207 = por %p205, %p206
    %p208 = scmp.ne.s32.totalorder %s197, %s200
    %p209 = scmp.eq.s32.totalorder %s48, 3
    %p210 = por %p208, %p209
    %p211 = scmp.ne.s32.totalorder %s200, %s201
    %p212 = scmp.eq.s32.totalorder %s48, 0
    %p213 = por %p211, %p212
    %p214 = scmp.ne.s32.totalorder %s200, %s201
    %p215 = scmp.eq.s32.totalorder %s49, 3
    %p216 = por %p214, %p215
    %p218 = scmp.ne.s32.totalorder %s201, %s217
    %p219 = scmp.eq.s32.totalorder %s49, 0
    %p220 = por %p218, %p219
    %s221 = sld [smem:[#allocation3 + %s50]]
    %s222 = sld [smem:[#allocation3 + %s62]]
    %s223 = ssub.s32 %s221, %s222
    %p224 = scmp.eq.s32.totalorder %s223, 0
    %s226 = sadd.s32 %s225, 1
    %s227 = scalar_select %p224, %s225, %s226
    %p230 = pneg %p224
    %p231 = scmp.eq.s32.totalorder %s43, 3
    %p232 = por %p230, %p231
    %p233 = scmp.ne.s32.totalorder %s225, %s228
    %p234 = scmp.eq.s32.totalorder %s43, 0
    %p235 = por %p233, %p234
    %p236 = scmp.ne.s32.totalorder %s225, %s228
    %p237 = scmp.eq.s32.totalorder %s48, 3
    %p238 = por %p236, %p237
    %p239 = scmp.ne.s32.totalorder %s228, %s229
    %p240 = scmp.eq.s32.totalorder %s48, 0
    %p241 = por %p239, %p240
    %p242 = scmp.ne.s32.totalorder %s228, %s229
    %p243 = scmp.eq.s32.totalorder %s49, 3
    %p244 = por %p242, %p243
    %p246 = scmp.ne.s32.totalorder %s229, %s245
    %p247 = scmp.eq.s32.totalorder %s49, 0
    %p248 = por %p246, %p247
    %p249 = scmp.le.s32.totalorder 1, %s43
    %p250 = scmp.lt.s32.totalorder %s43, 5
    %p251 = pnand %p249, %p250
    %p252 = pneg %p251
    // Predicated region
    $region9: #{_moe_ffn_forward.1} parent=5 // pred_check
      _
    $region10: #{_moe_ffn_forward.1} parent=5 // pred_check_branch
      %254 = sbr.rel (%p251) target = $region12
    $region11: #{_moe_ffn_forward.1} parent=5 // pred_region
      %s255 = ssub.s32 %s43, 1
    $region12: #{_moe_ffn_forward.1} parent=5 // pred_fallthru
      _
    %p256 = scmp.lt.s32.totalorder %s43, 4
    // Predicated region
    $region13: #{_moe_ffn_forward.1} parent=5 // pred_check
      %p257 = pneg %p256
    $region14: #{_moe_ffn_forward.1} parent=5 // pred_check_branch
      %259 = sbr.rel (%p257) target = $region16
    $region15: #{_moe_ffn_forward.1} parent=5 // pred_region
      // Predicated region
      $region17: #{_moe_ffn_forward.1} parent=15 // pred_check
        %p260 = pneg %p77
      $region18: #{_moe_ffn_forward.1} parent=15 // pred_check_branch
        %262 = sbr.rel (%p260) target = $region20
      $region19: #{_moe_ffn_forward.1} parent=15 // pred_region
        %s263 = sld [smem:[#allocation3 + %s50]]
        %s264 = smul.u32 4, %s263
        %p265 = scmp.lt.s32.totalorder %s264, 3
        %s266 = scalar_select %p265, %s264, 3
        %s267 = smul.addr %s266, 4
        %s268 = scalar_lea.vmem %s6, %s267
        %s269 = sld [smem:[#allocation3 + %s50]]
        %s270 = smul.u32 4, %s269
      $region20: #{_moe_ffn_forward.1} parent=15 // pred_fallthru
        _
      // Predicated region
      $region21: #{_moe_ffn_forward.1} parent=15 // pred_check
        %p271 = pneg %p105
      $region22: #{_moe_ffn_forward.1} parent=15 // pred_check_branch
        %273 = sbr.rel (%p271) target = $region24
      $region23: #{_moe_ffn_forward.1} parent=15 // pred_region
        %s274 = sld [smem:[#allocation3 + %s50]]
        %p275 = scmp.lt.s32.totalorder %s274, 0
        %s276 = scalar_select %p275, %s274, 0
        %s277 = scalar_lea.vmem %s7, %s276
        %s278 = sld [smem:[#allocation3 + %s50]]
      $region24: #{_moe_ffn_forward.1} parent=15 // pred_fallthru
        _
      // Predicated region
      $region25: #{_moe_ffn_forward.1} parent=15 // pred_check
        %p279 = pneg %p139
      $region26: #{_moe_ffn_forward.1} parent=15 // pred_check_branch
        %281 = sbr.rel (%p279) target = $region28
      $region27: #{_moe_ffn_forward.1} parent=15 // pred_region
        %s282 = sld [smem:[#allocation4 + %s50]]
        %s283 = sld [smem:[#allocation8 + %s50]]
        %s284 = smul.u32 %s51, %s283
        %p285 = scmp.lt.s32.totalorder %s282, 3
        %s286 = scalar_select %p285, %s282, 3
        %p287 = scmp.lt.s32.totalorder %s284, 0
        %s288 = scalar_select %p287, %s284, 0
        %s289 = smul.addr %s286, 4
        %s290 = sadd.s32 %s288, %s289
        %s291 = smul.addr %s290, 4
        %s292 = scalar_lea.vmem %s8, %s291
        %s293 = sld [smem:[#allocation4 + %s50]]
        %s294 = sld [smem:[#allocation8 + %s50]]
        %s295 = smul.u32 %s51, %s294
      $region28: #{_moe_ffn_forward.1} parent=15 // pred_fallthru
        _
      // Predicated region
      $region29: #{_moe_ffn_forward.1} parent=15 // pred_check
        %p296 = pneg %p173
      $region30: #{_moe_ffn_forward.1} parent=15 // pred_check_branch
        %298 = sbr.rel (%p296) target = $region32
      $region31: #{_moe_ffn_forward.1} parent=15 // pred_region
        %s299 = sld [smem:[#allocation4 + %s50]]
        %s300 = sld [smem:[#allocation8 + %s50]]
        %s301 = smul.u32 %s51, %s300
        %p302 = scmp.lt.s32.totalorder %s299, 3
        %s303 = scalar_select %p302, %s299, 3
        %p304 = scmp.lt.s32.totalorder %s301, 0
        %s305 = scalar_select %p304, %s301, 0
        %s306 = smul.addr %s303, 4
        %s307 = sadd.s32 %s305, %s306
        %s308 = smul.addr %s307, 4
        %s309 = scalar_lea.vmem %s9, %s308
        %s310 = sld [smem:[#allocation4 + %s50]]
        %s311 = sld [smem:[#allocation8 + %s50]]
        %s312 = smul.u32 %s51, %s311
      $region32: #{_moe_ffn_forward.1} parent=15 // pred_fallthru
        _
      // Predicated region
      $region33: #{_moe_ffn_forward.1} parent=15 // pred_check
        %p313 = pneg %p207
      $region34: #{_moe_ffn_forward.1} parent=15 // pred_check_branch
        %315 = sbr.rel (%p313) target = $region36
      $region35: #{_moe_ffn_forward.1} parent=15 // pred_region
        %s316 = sld [smem:[#allocation4 + %s50]]
        %s317 = sld [smem:[#allocation8 + %s50]]
        %s318 = smul.u32 %s51, %s317
        %s319 = smul.u32 8, %s318
        %p320 = scmp.lt.s32.totalorder %s316, 3
        %s321 = scalar_select %p320, %s316, 3
        %p322 = scmp.lt.s32.totalorder %s319, 7
        %s323 = scalar_select %p322, %s319, 7
        %s324 = smul.addr %s321, 8
        %s325 = sadd.s32 %s323, %s324
        %s326 = smul.addr %s325, 4
        %s327 = scalar_lea.vmem %s10, %s326
        %s328 = sld [smem:[#allocation4 + %s50]]
        %s329 = sld [smem:[#allocation8 + %s50]]
        %s330 = smul.u32 %s51, %s329
        %s331 = smul.u32 8, %s330
      $region36: #{_moe_ffn_forward.1} parent=15 // pred_fallthru
        _
    $region16: #{_moe_ffn_forward.1} parent=5 // pred_fallthru
      _
    %p332 = scmp.le.s32.totalorder 1, %s43
    %p333 = scmp.lt.s32.totalorder %s43, 5
    %p334 = pnand %p332, %p333
    %p335 = pneg %p334
    // Predicated region
    $region37: #{_moe_ffn_forward.1} parent=5 // pred_check
      _
    $region38: #{_moe_ffn_forward.1} parent=5 // pred_check_branch
      %337 = sbr.rel (%p334) target = $region40
    $region39: #{_moe_ffn_forward.1} parent=5 // pred_region
      %s338 = ssub.s32 %s43, 1
      %s339 = sld [smem:[#allocation3 + %s52]]
      %s340 = smul.u32 4, %s339
      %p341 = scmp.lt.s32.totalorder %s340, 3
      %s342 = scalar_select %p341, %s340, 3
      %s343 = smul.addr %s342, 4
      %s344 = scalar_lea.vmem %s6, %s343
      %p345 = pneg %p83
      %p346 = pneg %p80
      %s347 = sld [smem:[#allocation3 + %s52]]
      %p348 = scmp.lt.s32.totalorder %s347, 0
      %s349 = scalar_select %p348, %s347, 0
      %s350 = scalar_lea.vmem %s7, %s349
      %p351 = pneg %p111
      %p352 = pneg %p108
      %s353 = sld [smem:[#allocation4 + %s52]]
      %s354 = sld [smem:[#allocation8 + %s52]]
      %s355 = smul.u32 %s53, %s354
      %p356 = scmp.lt.s32.totalorder %s353, 3
      %s357 = scalar_select %p356, %s353, 3
      %p358 = scmp.lt.s32.totalorder %s355, 0
      %s359 = scalar_select %p358, %s355, 0
      %s360 = smul.addr %s357, 4
      %s361 = sadd.s32 %s359, %s360
      %s362 = smul.addr %s361, 4
      %s363 = scalar_lea.vmem %s8, %s362
      %p364 = pneg %p145
      %p365 = pneg %p142
      %s366 = sld [smem:[#allocation4 + %s52]]
      %s367 = sld [smem:[#allocation8 + %s52]]
      %s368 = smul.u32 %s53, %s367
      %p369 = scmp.lt.s32.totalorder %s366, 3
      %s370 = scalar_select %p369, %s366, 3
      %p371 = scmp.lt.s32.totalorder %s368, 0
      %s372 = scalar_select %p371, %s368, 0
      %s373 = smul.addr %s370, 4
      %s374 = sadd.s32 %s372, %s373
      %s375 = smul.addr %s374, 4
      %s376 = scalar_lea.vmem %s9, %s375
      %p377 = pneg %p179
      %p378 = pneg %p176
      %s379 = sld [smem:[#allocation4 + %s52]]
      %s380 = sld [smem:[#allocation8 + %s52]]
      %s381 = smul.u32 %s53, %s380
      %s382 = smul.u32 8, %s381
      %p383 = scmp.lt.s32.totalorder %s379, 3
      %s384 = scalar_select %p383, %s379, 3
      %p385 = scmp.lt.s32.totalorder %s382, 7
      %s386 = scalar_select %p385, %s382, 7
      %s387 = smul.addr %s384, 8
      %s388 = sadd.s32 %s386, %s387
      %s389 = smul.addr %s388, 4
      %s390 = scalar_lea.vmem %s10, %s389
      %p391 = pneg %p213
      %p392 = pneg %p210
      %p393 = pneg %p241
      %p394 = pneg %p238
      %s395 = sld [smem:[#allocation3 + %s52]]
      %s396 = smul.u32 4, %s395
      %p397 = scmp.lt.s32.totalorder %s396, 3
      %s398 = scalar_select %p397, %s396, 3
      %s399 = smul.addr %s398, 8
      %s400 = scalar_lea.vmem %s11, %s399
      %s401 = sld [smem:[#allocation3 + %s52]]
      %s402 = smul.u32 4, %s401
      %p403 = scmp.lt.s32.totalorder %s402, 3
      %s404 = scalar_select %p403, %s402, 3
      %s405 = smul.addr %s404, 4
      %s406 = scalar_lea.vmem %s6, %s405
      %s407 = sld [smem:[#allocation3 + %s52]]
      %s408 = smul.u32 4, %s407
      %s409 = sld [smem:[#allocation3 + %s52]]
      %p410 = scmp.lt.s32.totalorder %s409, 0
      %s411 = scalar_select %p410, %s409, 0
      %s412 = scalar_lea.vmem %s7, %s411
      %s413 = sld [smem:[#allocation3 + %s52]]
      %s414 = sld [smem:[#allocation4 + %s52]]
      %s415 = sld [smem:[#allocation8 + %s52]]
      %s416 = smul.u32 %s53, %s415
      %p417 = scmp.lt.s32.totalorder %s414, 3
      %s418 = scalar_select %p417, %s414, 3
      %p419 = scmp.lt.s32.totalorder %s416, 0
      %s420 = scalar_select %p419, %s416, 0
      %s421 = smul.addr %s418, 4
      %s422 = sadd.s32 %s420, %s421
      %s423 = smul.addr %s422, 4
      %s424 = scalar_lea.vmem %s8, %s423
      %s425 = sld [smem:[#allocation4 + %s52]]
      %s426 = sld [smem:[#allocation8 + %s52]]
      %s427 = smul.u32 %s53, %s426
      %s428 = sld [smem:[#allocation4 + %s52]]
      %s429 = sld [smem:[#allocation8 + %s52]]
      %s430 = smul.u32 %s53, %s429
      %p431 = scmp.lt.s32.totalorder %s428, 3
      %s432 = scalar_select %p431, %s428, 3
      %p433 = scmp.lt.s32.totalorder %s430, 0
      %s434 = scalar_select %p433, %s430, 0
      %s435 = smul.addr %s432, 4
      %s436 = sadd.s32 %s434, %s435
      %s437 = smul.addr %s436, 4
      %s438 = scalar_lea.vmem %s9, %s437
      %s439 = sld [smem:[#allocation4 + %s52]]
      %s440 = sld [smem:[#allocation8 + %s52]]
      %s441 = smul.u32 %s53, %s440
      %s442 = sld [smem:[#allocation4 + %s52]]
      %s443 = sld [smem:[#allocation8 + %s52]]
      %s444 = smul.u32 %s53, %s443
      %s445 = smul.u32 8, %s444
      %p446 = scmp.lt.s32.totalorder %s442, 3
      %s447 = scalar_select %p446, %s442, 3
      %p448 = scmp.lt.s32.totalorder %s445, 7
      %s449 = scalar_select %p448, %s445, 7
      %s450 = smul.addr %s447, 8
      %s451 = sadd.s32 %s449, %s450
      %s452 = smul.addr %s451, 4
      %s453 = scalar_lea.vmem %s10, %s452
      %s454 = sld [smem:[#allocation4 + %s52]]
      %s455 = sld [smem:[#allocation8 + %s52]]
      %s456 = smul.u32 %s53, %s455
      %s457 = smul.u32 8, %s456
      %s458 = sld [smem:[#allocation3 + %s52]]
      %s459 = smul.u32 4, %s458
      %p460 = scmp.lt.s32.totalorder %s459, 3
      %s461 = scalar_select %p460, %s459, 3
      %s462 = smul.addr %s461, 8
      %s463 = scalar_lea.vmem %s11, %s462
      %s464 = sld [smem:[#allocation3 + %s52]]
      %s465 = smul.u32 4, %s464
      %s467 = sld [smem:[#allocation7 + %s52]]
      %p468 = scmp.eq.s32.totalorder %s467, 1
      %p469 = scmp.eq.s32.totalorder %s53, 0
      %p470 = pnand %p468, %p469
      %p471 = pneg %p470
      // Predicated region
      $region41: #{_moe_ffn_forward.1} parent=39 // pred_check
        _
      $region42: #{_moe_ffn_forward.1} parent=39 // pred_check_branch
        %473 = sbr.rel (%p470) target = $region44
      $region43: #{_moe_ffn_forward.1} parent=39 // pred_region
        %vm474 = vcmask 261120
        %475 = vst.msk [vmem:[%s463] sm:$0xff] %vm474, 0.0
        %476 = vst.msk [vmem:[%s463 + $0x8] sm:$0xff] %vm474, 0.0
        %477 = vst.msk [vmem:[%s463 + $0x10] sm:$0xff] %vm474, 0.0
        %478 = vst.msk [vmem:[%s463 + $0x18] sm:$0xff] %vm474, 0.0
      $region44: #{_moe_ffn_forward.1} parent=39 // pred_fallthru
        _
      %s479 = sld [smem:[#allocation8 + %s52]]
      %p480 = scmp.eq.s32.totalorder %s479, 1
      // Predicated region
      $region45: #{_moe_ffn_forward.1} parent=39 // pred_check
        %p481 = pneg %p480
      $region46: #{_moe_ffn_forward.1} parent=39 // pred_check_branch
        %483 = sbr.rel (%p481) target = $region48
      $region47: #{_moe_ffn_forward.1} parent=39 // pred_region
        %v484 = vld [vmem:[%s406] sm:$0xf]
        %v485 = vld [vmem:[%s406 + $0x4] sm:$0xf]
        %v486 = vld [vmem:[%s406 + $0x8] sm:$0xf]
        %v487 = vld [vmem:[%s406 + $0xc] sm:$0xf]
        %v488 = vld [vmem:[%s424] sm:$0xf]
        %v489 = vld [vmem:[%s424 + $0x4] sm:$0xf]
        %v490 = vld [vmem:[%s424 + $0x8] sm:$0xf]
        %v491 = vld [vmem:[%s424 + $0xc] sm:$0xf]
        %v496 = vunpack.c.l.b16 %v484
        %v497 = vunpack.c.l.b16 %v485
        %v498 = vunpack.c.l.b16 %v486
        %v499 = vunpack.c.l.b16 %v487
        %v500 = vpack.c.b16 %v497, %v496
        %v501 = vpack.c.b16 %v499, %v498
        %v506 = vunpack.c.l.b16 %v488
        %v507 = vunpack.c.l.b16 %v489
        %v508 = vunpack.c.l.b16 %v490
        %v509 = vunpack.c.l.b16 %v491
        %v510 = vpack.c.b16 %v507, %v506
        %v511 = vpack.c.b16 %v509, %v508
        %vm514 = vcmask 261120
        %v516 = vsel %vm514, %v500, 0
        %v519 = vsel %vm514, %v501, 0
        %521 = vmatprep.subr.bf16.mxu0 0
        %522 = vmatpush1.bf16.msra.mxu0 0
        %523 = vmatprep.subr.bf16.mxu0 0
        %524 = vmatpush1.bf16.msra.mxu0 0
        %525 = vmatprep.subr.bf16.mxu0 0
        %526 = vmatpush1.bf16.msra.mxu0 0
        %527 = vmatprep.subr.bf16.mxu0 0
        %528 = vmatpush1.bf16.msra.mxu0 0
        %529 = vmatprep.subr.bf16.mxu0 0
        %530 = vmatpush1.bf16.msra.mxu0 0
        %531 = vmatprep.subr.bf16.mxu0 0
        %532 = vmatpush1.bf16.msra.mxu0 0
        %533 = vmatprep.subr.bf16.mxu0 0
        %534 = vmatpush1.bf16.msra.mxu0 %v511
        %535 = vmatprep.subr.bf16.mxu0 0
        %536 = vmatpush1.bf16.msra.mxu0 %v510
        %537 = vmatprep.subr.bf16.mxu0 0
        %538 = vmatpush2.bf16.msra.mxu0 0
        %539 = vmatprep.subr.bf16.mxu0 0
        %540 = vmatpush2.bf16.msra.mxu0 0
        %541 = vmatprep.subr.bf16.mxu0 0
        %542 = vmatpush2.bf16.msra.mxu0 0
        %543 = vmatprep.subr.bf16.mxu0 0
        %544 = vmatpush2.bf16.msra.mxu0 0
        %545 = vmatprep.subr.bf16.mxu0 0
        %546 = vmatpush2.bf16.msra.mxu0 0
        %547 = vmatprep.subr.bf16.mxu0 0
        %548 = vmatpush2.bf16.msra.mxu0 0
        %549 = vmatprep.subr.bf16.mxu0 0
        %550 = vmatpush2.bf16.msra.mxu0 0
        %551 = vmatprep.subr.bf16.mxu0 0
        %552 = vmatpush2.bf16.msra.mxu0 0
        %553 = vmatprep.mubr.bf16.mxu0 0
        %554 = vmatmul.mubr.bf16.gmra.mxu0 %v516
        %v555 = vpop.f32.mrf.mxu0
        %v556 = vadd.f32 0.0, %v555
        %v557 = vpop.f32.mrf.mxu0
        %v558 = vpop.f32.mrf.mxu0
        %v559 = vadd.f32 0.0, %v558
        %v560 = vpop.f32.mrf.mxu0
        %561 = vmatprep.mubr.bf16.mxu0 0
        %562 = vmatmul.mubr.bf16.gmra.mxu0 %v519
        %v563 = vpop.f32.mrf.mxu0
        %v564 = vadd.f32 0.0, %v563
        %v565 = vpop.f32.mrf.mxu0
        %v566 = vpop.f32.mrf.mxu0
        %v567 = vadd.f32 0.0, %v566
        %v568 = vpop.f32.mrf.mxu0
        %569 = vdwg.mxu0
        %v570 = vld [vmem:[%s438] sm:$0xf]
        %v571 = vld [vmem:[%s438 + $0x4] sm:$0xf]
        %v572 = vld [vmem:[%s438 + $0x8] sm:$0xf]
        %v573 = vld [vmem:[%s438 + $0xc] sm:$0xf]
        %v578 = vunpack.c.l.b16 %v570
        %v579 = vunpack.c.l.b16 %v571
        %v580 = vunpack.c.l.b16 %v572
        %v581 = vunpack.c.l.b16 %v573
        %v582 = vpack.c.b16 %v579, %v578
        %v583 = vpack.c.b16 %v581, %v580
        %586 = vmatprep.subr.bf16.mxu0 0
        %587 = vmatpush1.bf16.msra.mxu0 0
        %588 = vmatprep.subr.bf16.mxu0 0
        %589 = vmatpush1.bf16.msra.mxu0 0
        %590 = vmatprep.subr.bf16.mxu0 0
        %591 = vmatpush1.bf16.msra.mxu0 0
        %592 = vmatprep.subr.bf16.mxu0 0
        %593 = vmatpush1.bf16.msra.mxu0 0
        %594 = vmatprep.subr.bf16.mxu0 0
        %595 = vmatpush1.bf16.msra.mxu0 0
        %596 = vmatprep.subr.bf16.mxu0 0
        %597 = vmatpush1.bf16.msra.mxu0 0
        %598 = vmatprep.subr.bf16.mxu0 0
        %599 = vmatpush1.bf16.msra.mxu0 %v583
        %600 = vmatprep.subr.bf16.mxu0 0
        %601 = vmatpush1.bf16.msra.mxu0 %v582
        %602 = vmatprep.subr.bf16.mxu0 0
        %603 = vmatpush2.bf16.msra.mxu0 0
        %604 = vmatprep.subr.bf16.mxu0 0
        %605 = vmatpush2.bf16.msra.mxu0 0
        %606 = vmatprep.subr.bf16.mxu0 0
        %607 = vmatpush2.bf16.msra.mxu0 0
        %608 = vmatprep.subr.bf16.mxu0 0
        %609 = vmatpush2.bf16.msra.mxu0 0
        %610 = vmatprep.subr.bf16.mxu0 0
        %611 = vmatpush2.bf16.msra.mxu0 0
        %612 = vmatprep.subr.bf16.mxu0 0
        %613 = vmatpush2.bf16.msra.mxu0 0
        %614 = vmatprep.subr.bf16.mxu0 0
        %615 = vmatpush2.bf16.msra.mxu0 0
        %616 = vmatprep.subr.bf16.mxu0 0
        %617 = vmatpush2.bf16.msra.mxu0 0
        %618 = vmatprep.mubr.bf16.mxu0 0
        %619 = vmatmul.mubr.bf16.gmra.mxu0 %v516
        %v620 = vpop.f32.mrf.mxu0
        %v621 = vadd.f32 0.0, %v620
        %v622 = vpop.f32.mrf.mxu0
        %v623 = vpop.f32.mrf.mxu0
        %v624 = vadd.f32 0.0, %v623
        %v625 = vpop.f32.mrf.mxu0
        %626 = vmatprep.mubr.bf16.mxu0 0
        %627 = vmatmul.mubr.bf16.gmra.mxu0 %v519
        %v628 = vpop.f32.mrf.mxu0
        %v629 = vadd.f32 0.0, %v628
        %v630 = vpop.f32.mrf.mxu0
        %v631 = vpop.f32.mrf.mxu0
        %v632 = vadd.f32 0.0, %v631
        %v633 = vpop.f32.mrf.mxu0
        %634 = vdwg.mxu0
        %v635 = vlaneseq
        %v636 = vshrl.u32 %v635, 7
        %v637 = vadd.s32 %v636, 8
        %v638 = vadd.s32 %v636, 16
        %v639 = vadd.s32 %v636, 24
        %s640 = sld [smem:[#allocation5 + %s52]]
        %v641 = vstv %s640
        %vm642 = vcmp.ge.s32.totalorder %v636, %v641
        %vm643 = vcmp.ge.s32.totalorder %v637, %v641
        %vm644 = vcmp.ge.s32.totalorder %v638, %v641
        %vm645 = vcmp.ge.s32.totalorder %v639, %v641
        %s646 = sld [smem:[#allocation6 + %s52]]
        %v647 = vstv %s646
        %vm648 = vcmp.lt.s32.totalorder %v636, %v647
        %vm649 = vcmp.lt.s32.totalorder %v637, %v647
        %vm650 = vcmp.lt.s32.totalorder %v638, %v647
        %vm651 = vcmp.lt.s32.totalorder %v639, %v647
        %vm652 = vmand %vm642, %vm648
        %vm653 = vmand %vm643, %vm649
        %vm654 = vmand %vm644, %vm650
        %vm655 = vmand %vm645, %vm651
        %v656 = vld [vmem:[%s412] sm:$0x1]
        %v657 = vlaneseq
        %v658 = vshrl.u32 %v657, 7
        %v659 = vsub.s32 0, %v658
        %v660 = vrot.slane %v656, %v659
        %662 = vbcast.lane.b32.xlu0 %v660, 256
        %v663 = vpop.permute.xlu0 %662
        %s665 = sor.u32 256, 8
        %666 = vbcast.lane.b32.xlu0 %v660, %s665
        %v667 = vpop.permute.xlu0 %666
        %s669 = sor.u32 256, 16
        %670 = vbcast.lane.b32.xlu0 %v660, %s669
        %v671 = vpop.permute.xlu0 %670
        %s673 = sor.u32 256, 24
        %674 = vbcast.lane.b32.xlu0 %v660, %s673
        %v675 = vpop.permute.xlu0 %674
        %v676 = vsel %vm652, %v663, 0.0
        %v677 = vsel %vm653, %v667, 0.0
        %v678 = vsel %vm654, %v671, 0.0
        %v679 = vsel %vm655, %v675, 0.0
        %v680 = vxor.u32 %v556, 2147483648
        %v681 = vxor.u32 %v559, 2147483648
        %v682 = vxor.u32 %v564, 2147483648
        %v683 = vxor.u32 %v567, 2147483648
        %v684 = vmul.f32 %v680, 1.442695
        %v685 = vpow.pop %v684
        %v686 = vmul.f32 %v681, 1.442695
        %v687 = vpow.pop %v686
        %v688 = vmul.f32 %v682, 1.442695
        %v689 = vpow.pop %v688
        %v690 = vmul.f32 %v683, 1.442695
        %v691 = vpow.pop %v690
        %v692 = vadd.f32 %v685, 1.0
        %v693 = vadd.f32 %v687, 1.0
        %v694 = vadd.f32 %v689, 1.0
        %v695 = vadd.f32 %v691, 1.0
        %v696 = vrcp.pop %v692
        %v697 = vmul.f32 1.0, %v696
        %v698 = vrcp.pop %v693
        %v699 = vmul.f32 1.0, %v698
        %v700 = vrcp.pop %v694
        %v701 = vmul.f32 1.0, %v700
        %v702 = vrcp.pop %v695
        %v703 = vmul.f32 1.0, %v702
        %v704 = vmul.f32 %v556, %v697
        %v705 = vmul.f32 %v559, %v699
        %v706 = vmul.f32 %v564, %v701
        %v707 = vmul.f32 %v567, %v703
        %v708 = vmul.f32 %v704, %v621
        %v709 = vmul.f32 %v705, %v624
        %v710 = vmul.f32 %v706, %v629
        %v711 = vmul.f32 %v707, %v632
        %v712 = vmul.f32 %v708, %v676
        %v713 = vmul.f32 %v709, %v677
        %v714 = vmul.f32 %v710, %v678
        %v715 = vmul.f32 %v711, %v679
        %v716 = vld [vmem:[%s463] sm:$0xff]
        %v717 = vld [vmem:[%s463 + $0x8] sm:$0xff]
        %v718 = vld [vmem:[%s463 + $0x10] sm:$0xff]
        %v719 = vld [vmem:[%s463 + $0x18] sm:$0xff]
        %v720 = vpack.c.bf16 %v713, %v712
        %v721 = vpack.c.bf16 %v715, %v714
        %v722 = vld [vmem:[%s453] sm:$0xf]
        %v723 = vld [vmem:[%s453 + $0x4] sm:$0xf]
        %v724 = vld [vmem:[%s453 + $0x8] sm:$0xf]
        %v725 = vld [vmem:[%s453 + $0xc] sm:$0xf]
        %v726 = vld [vmem:[%s453 + $0x10] sm:$0xf]
        %v727 = vld [vmem:[%s453 + $0x14] sm:$0xf]
        %v728 = vld [vmem:[%s453 + $0x18] sm:$0xf]
        %v729 = vld [vmem:[%s453 + $0x1c] sm:$0xf]
        %v738 = vunpack.c.l.b16 %v722
        %v739 = vunpack.c.l.b16 %v723
        %v740 = vunpack.c.l.b16 %v724
        %v741 = vunpack.c.l.b16 %v725
        %v742 = vunpack.c.l.b16 %v726
        %v743 = vunpack.c.l.b16 %v727
        %v744 = vunpack.c.l.b16 %v728
        %v745 = vunpack.c.l.b16 %v729
        %v746 = vpack.c.b16 %v739, %v738
        %v747 = vpack.c.b16 %v741, %v740
        %v748 = vpack.c.b16 %v743, %v742
        %v749 = vpack.c.b16 %v745, %v744
        %vm754 = vcmask 523264
        %v756 = vsel %vm754, %v720, 0
        %v759 = vsel %vm754, %v721, 0
        %761 = vmatprep.subr.bf16.mxu0 0
        %762 = vmatpush1.bf16.msra.mxu0 0
        %763 = vmatprep.subr.bf16.mxu0 0
        %764 = vmatpush1.bf16.msra.mxu0 0
        %765 = vmatprep.subr.bf16.mxu0 0
        %766 = vmatpush1.bf16.msra.mxu0 0
        %767 = vmatprep.subr.bf16.mxu0 0
        %768 = vmatpush1.bf16.msra.mxu0 0
        %769 = vmatprep.subr.bf16.mxu0 0
        %770 = vmatpush1.bf16.msra.mxu0 %v749
        %771 = vmatprep.subr.bf16.mxu0 0
        %772 = vmatpush1.bf16.msra.mxu0 %v748
        %773 = vmatprep.subr.bf16.mxu0 0
        %774 = vmatpush1.bf16.msra.mxu0 %v747
        %775 = vmatprep.subr.bf16.mxu0 0
        %776 = vmatpush1.bf16.msra.mxu0 %v746
        %777 = vmatprep.subr.bf16.mxu0 0
        %778 = vmatpush2.bf16.msra.mxu0 0
        %779 = vmatprep.subr.bf16.mxu0 0
        %780 = vmatpush2.bf16.msra.mxu0 0
        %781 = vmatprep.subr.bf16.mxu0 0
        %782 = vmatpush2.bf16.msra.mxu0 0
        %783 = vmatprep.subr.bf16.mxu0 0
        %784 = vmatpush2.bf16.msra.mxu0 0
        %785 = vmatprep.subr.bf16.mxu0 0
        %786 = vmatpush2.bf16.msra.mxu0 0
        %787 = vmatprep.subr.bf16.mxu0 0
        %788 = vmatpush2.bf16.msra.mxu0 0
        %789 = vmatprep.subr.bf16.mxu0 0
        %790 = vmatpush2.bf16.msra.mxu0 0
        %791 = vmatprep.subr.bf16.mxu0 0
        %792 = vmatpush2.bf16.msra.mxu0 0
        %793 = vmatprep.mubr.bf16.mxu0 0
        %794 = vmatmul.mubr.bf16.gmra.mxu0 %v756
        %v795 = vpop.f32.mrf.mxu0
        %v796 = vadd.f32 0.0, %v795
        %v797 = vpop.f32.mrf.mxu0
        %v798 = vpop.f32.mrf.mxu0
        %v799 = vadd.f32 0.0, %v798
        %v800 = vpop.f32.mrf.mxu0
        %801 = vmatprep.mubr.bf16.mxu0 0
        %802 = vmatmul.mubr.bf16.gmra.mxu0 %v759
        %v803 = vpop.f32.mrf.mxu0
        %v804 = vadd.f32 0.0, %v803
        %v805 = vpop.f32.mrf.mxu0
        %v806 = vpop.f32.mrf.mxu0
        %v807 = vadd.f32 0.0, %v806
        %v808 = vpop.f32.mrf.mxu0
        %809 = vdwg.mxu0
        %v810 = vadd.f32 %v716, %v796
        %v811 = vadd.f32 %v717, %v799
        %v812 = vadd.f32 %v718, %v804
        %v813 = vadd.f32 %v719, %v807
        %814 = vst.msk [vmem:[%s463] sm:$0xff] %vm514, %v810
        %815 = vst.msk [vmem:[%s463 + $0x8] sm:$0xff] %vm514, %v811
        %816 = vst.msk [vmem:[%s463 + $0x10] sm:$0xff] %vm514, %v812
        %817 = vst.msk [vmem:[%s463 + $0x18] sm:$0xff] %vm514, %v813
      $region48: #{_moe_ffn_forward.1} parent=39 // pred_fallthru
        _
      %s818 = sld [smem:[#allocation3 + %s52]]
      %s819 = smul.u32 4, %s818
      %p820 = scmp.lt.s32.totalorder %s819, 3
      %s821 = scalar_select %p820, %s819, 3
      %s822 = smul.addr %s821, 8
      %s823 = scalar_lea.vmem %s11, %s822
      // Predicated region
      $region49: #{_moe_ffn_forward.1} parent=39 // pred_check
        %p824 = pneg %p238
      $region50: #{_moe_ffn_forward.1} parent=39 // pred_check_branch
        %826 = sbr.rel (%p824) target = $region52
      $region51: #{_moe_ffn_forward.1} parent=39 // pred_region
        %s827 = sld [smem:[#allocation3 + %s52]]
        %s828 = smul.u32 4, %s827
      $region52: #{_moe_ffn_forward.1} parent=39 // pred_fallthru
        _
    $region40: #{_moe_ffn_forward.1} parent=5 // pred_fallthru
      _
    %p829 = scmp.le.s32.totalorder 2, %s43
    // Predicated region
    $region53: #{_moe_ffn_forward.1} parent=5 // pred_check
      %p830 = pneg %p829
    $region54: #{_moe_ffn_forward.1} parent=5 // pred_check_branch
      %832 = sbr.rel (%p830) target = $region56
    $region55: #{_moe_ffn_forward.1} parent=5 // pred_region
      %s833 = ssub.s32 %s43, 2
      // Predicated region
      $region57: #{_moe_ffn_forward.1} parent=55 // pred_check
        %p834 = pneg %p244
      $region58: #{_moe_ffn_forward.1} parent=55 // pred_check_branch
        %836 = sbr.rel (%p834) target = $region60
      $region59: #{_moe_ffn_forward.1} parent=55 // pred_region
        %s837 = sld [smem:[#allocation3 + %s54]]
        %s838 = smul.u32 4, %s837
        %p839 = scmp.lt.s32.totalorder %s838, 3
        %s840 = scalar_select %p839, %s838, 3
        %s841 = smul.addr %s840, 8
        %s842 = scalar_lea.vmem %s11, %s841
      $region60: #{_moe_ffn_forward.1} parent=55 // pred_fallthru
        _
    $region56: #{_moe_ffn_forward.1} parent=5 // pred_fallthru
      _
  $region6: #{_moe_ffn_forward.1} parent=0 // loop_footer
    %s47 = sadd.s32 1, %s43
  $region7: #{_moe_ffn_forward.1} parent=0 // loop_footer_branch
    %42 = sbr.rel target = $region3
  $region8: #{_moe_ffn_forward.1} parent=0 // loop_exit
    _

</llo_original>
